<compile_context>
chip_gen: v7x
topology: tpu7x:2x2x1
jax: 0.10.0
libtpu: 0.0.40
codegen_flags: <defaults>
</compile_context>

<pallas_src>
import math

import jax
import jax.numpy as jnp
from jax.experimental import pallas as pl
from jax.experimental.pallas import tpu as pltpu


def _gelu_tanh(x):
    # GELU(approximate='tanh'): 0.5*x*(1+tanh(sqrt(2/pi)*(x+0.044715*x^3)))
    c = math.sqrt(2.0 / math.pi)
    return 0.5 * x * (1.0 + jnp.tanh(c * (x + 0.044715 * x * x * x)))


def _round_up(a, b):
    return (a + b - 1) // b * b


def mlp_kernel(x_ref, w_fc_ref, b_fc_ref, w_proj_ref, b_proj_ref, o_ref, acc_ref):
    # x_ref: (tm, C) bf16, w_fc_ref: (C, th) bf16, b_fc_ref: (1, th) f32,
    # w_proj_ref: (th, C) bf16, b_proj_ref: (1, C) f32,
    # o_ref: (tm, C) out dtype, acc_ref: (tm, C) f32 scratch accumulator.
    k = pl.program_id(1)

    # First matmul on the MXU, f32 accumulate; bias + tanh-GELU epilogue in f32
    # (tanh lands on the EUP slot, effectively free next to the MXU work).
    h = jnp.dot(x_ref[...], w_fc_ref[...], preferred_element_type=jnp.float32)
    h = _gelu_tanh(h + b_fc_ref[...])
    # This hidden chunk's contribution to the output row tile (f32 accumulate).
    contrib = jnp.dot(h.astype(w_proj_ref.dtype), w_proj_ref[...],
                      preferred_element_type=jnp.float32)

    # No separate zero-init pass: first chunk writes, later chunks accumulate.
    @pl.when(k == 0)
    def _():
        acc_ref[...] = contrib

    @pl.when(k != 0)
    def _():
        acc_ref[...] += contrib

    @pl.when(k == pl.num_programs(1) - 1)
    def _():
        o_ref[...] = (acc_ref[...] + b_proj_ref[...]).astype(o_ref.dtype)


def _tile_config(out_itemsize, C):
    """Pick (tm, th, vmem_limit_bytes) from the TPU generation's VMEM size."""
    vmem_bytes = None
    try:
        vmem_bytes = int(pltpu.get_tpu_info().vmem_capacity_bytes)
    except Exception:
        pass
    if vmem_bytes is None:
        try:
            kind = jax.devices()[0].device_kind.lower()
        except Exception:
            kind = ""
        vmem_bytes = 64 * 1024 * 1024 if "v7" in kind else 128 * 1024 * 1024

    if vmem_bytes <= 64 * 1024 * 1024:
        # v7x-class: 64 MiB per TensorCore -> stay well clear of the ceiling.
        tm, th, limit = 512, 512, 48 * 1024 * 1024
    else:
        # v5e / v6e: 128 MiB physical VMEM -> large tiles, ~100 MiB limit.
        tm, th, limit = 1024, 1024, 100 * 1024 * 1024

    def fits(tm_, th_):
        b = 2 * tm_ * C * 2               # x tile, bf16, double-buffered
        b += 2 * C * th_ * 2              # w_fc chunk, bf16, double-buffered
        b += 2 * th_ * C * 2              # w_proj chunk, bf16, double-buffered
        b += 2 * tm_ * C * out_itemsize   # out tile, double-buffered
        b += tm_ * C * 4                  # f32 accumulator scratch
        b += tm_ * th_ * (4 + 2)          # h (f32) + its bf16 cast copy
        b += 4 * (th_ + C) * 4            # biases (negligible)
        return b <= 0.85 * limit          # headroom for Mosaic internal scratch

    while not fits(tm, th) and th > 256:
        th //= 2
    while not fits(tm, th) and tm > 256:
        tm //= 2
    return tm, th, limit


def mlp_forward(x, w_fc, b_fc, w_proj, b_proj, *, tm=None, th=None,
                compute_dtype=jnp.bfloat16, deep_weight_buffering=False):
    """x: (B, T, C). Weights: w_fc (C, 4C), b_fc (4C,), w_proj (4C, C), b_proj (C,).

    Pass weights already cast to `compute_dtype` (bf16) to avoid a per-call
    HBM cast pass in the wrapper (the astype below is then a no-op).
    Note: hidden activations are cast to bf16 for the second matmul; this is
    the dominant precision difference vs a full-f32 PyTorch reference.
    """
    B, T, C = x.shape
    H = w_fc.shape[1]
    M = B * T
    out_dtype = x.dtype

    auto_tm, auto_th, vmem_limit = _tile_config(jnp.dtype(out_dtype).itemsize, C)
    tm = auto_tm if tm is None else tm
    th = auto_th if th is None else th

    # Row tile: multiple of 256 to fill the MXU (256x256 on v6e/v7x, fine for
    # v5e's 128x128), clamped to the padded token count for small/decode shapes.
    # TODO(synk): for tiny-M decode shapes on v7x, consider splitting the hidden
    # axis across the 2 TCs instead so neither core idles.
    tm = min(tm, _round_up(M, 256))
    Mp = _round_up(M, tm)

    # Hidden tile: lane-aligned; pad H up to a multiple of th (zero fc columns /
    # proj rows contribute exactly zero) instead of falling back to th=H.
    th = min(th, _round_up(H, 128))
    Hp = _round_up(H, th)

    x2 = x.reshape(M, C).astype(compute_dtype)
    if Mp != M:
        x2 = jnp.pad(x2, ((0, Mp - M), (0, 0)))

    # No-ops when the caller already provides compute_dtype weights.
    w_fc_c = w_fc.astype(compute_dtype)
    w_proj_c = w_proj.astype(compute_dtype)
    b_fc2 = b_fc.reshape(1, H).astype(jnp.float32)
    if Hp != H:
        w_fc_c = jnp.pad(w_fc_c, ((0, 0), (0, Hp - H)))
        w_proj_c = jnp.pad(w_proj_c, ((0, Hp - H), (0, 0)))
        b_fc2 = jnp.pad(b_fc2, ((0, 0), (0, Hp - H)))
    b_proj2 = b_proj.reshape(1, C).astype(jnp.float32)

    n_row_tiles = Mp // tm
    n_h_tiles = Hp // th

    # Advisory cost: both weight matrices are re-streamed once per row tile.
    flops = 4 * Mp * C * Hp  # two matmuls: 2*M*C*H each
    bytes_accessed = (
        x2.size * x2.dtype.itemsize
        + n_row_tiles * (w_fc_c.size * w_fc_c.dtype.itemsize
                         + w_proj_c.size * w_proj_c.dtype.itemsize
                         + b_fc2.size * 4)
        + b_proj2.size * 4
        + Mp * C * jnp.dtype(out_dtype).itemsize)

    # Optional deeper buffering of the weight streams only (v5e/v6e headroom);
    # enable if xprof wall time still exceeds the MXU roofline after tiling.
    if deep_weight_buffering:
        w_fc_spec = pl.BlockSpec((C, th), lambda i, k: (0, k),
                                 pipeline_mode=pl.Buffered(3))
        w_proj_spec = pl.BlockSpec((th, C), lambda i, k: (k, 0),
                                   pipeline_mode=pl.Buffered(3))
    else:
        w_fc_spec = pl.BlockSpec((C, th), lambda i, k: (0, k))
        w_proj_spec = pl.BlockSpec((th, C), lambda i, k: (k, 0))

    out = pl.pallas_call(
        mlp_kernel,
        out_shape=jax.ShapeDtypeStruct((Mp, C), out_dtype),
        grid_spec=pltpu.PrefetchScalarGridSpec(
            num_scalar_prefetch=0,
            grid=(n_row_tiles, n_h_tiles),   # rows (parallel), hidden (reduction, last)
            in_specs=[
                pl.BlockSpec((tm, C), lambda i, k: (i, 0)),   # x row tile (resident over k)
                w_fc_spec,                                    # fc weight chunk
                pl.BlockSpec((1, th), lambda i, k: (0, k)),   # fc bias chunk
                w_proj_spec,                                  # proj weight chunk
                pl.BlockSpec((1, C), lambda i, k: (0, 0)),    # proj bias
            ],
            out_specs=pl.BlockSpec((tm, C), lambda i, k: (i, 0)),
            scratch_shapes=[pltpu.VMEM((tm, C), jnp.float32)],
        ),
        compiler_params=pltpu.CompilerParams(
            dimension_semantics=("parallel", "arbitrary"),
            vmem_limit_bytes=vmem_limit,
        ),
        cost_estimate=pl.CostEstimate(
            flops=flops, transcendentals=Mp * Hp, bytes_accessed=bytes_accessed),
    )(x2, w_fc_c, b_fc2, w_proj_c, b_proj2)

    if Mp != M:
        out = out[:M]
    return out.reshape(B, T, C)


def mlp_reference(x, w_fc, b_fc, w_proj, b_proj):
    h = jnp.einsum("btc,ch->bth", x, w_fc) + b_fc
    h = _gelu_tanh(h)
    return jnp.einsum("bth,hc->btc", h, w_proj) + b_proj


if __name__ == "__main__":
    # Small config: batch=2, seq=8, n_embd=32 -> hidden=128
    B, T, C = 2, 8, 32
    H = 4 * C

    key = jax.random.PRNGKey(0)
    kx, k1, k2, k3, k4 = jax.random.split(key, 5)

    x = jax.random.normal(kx, (B, T, C), dtype=jnp.float32)
    # nn.Linear default init ~ U(-1/sqrt(fan_in), 1/sqrt(fan_in)); deterministic here.
    w_fc = jax.random.uniform(k1, (C, H), jnp.float32,
                              minval=-1.0 / math.sqrt(C), maxval=1.0 / math.sqrt(C))
    b_fc = jax.random.uniform(k2, (H,), jnp.float32,
                              minval=-1.0 / math.sqrt(C), maxval=1.0 / math.sqrt(C))
    w_proj = jax.random.uniform(k3, (H, C), jnp.float32,
                                minval=-1.0 / math.sqrt(H), maxval=1.0 / math.sqrt(H))
    b_proj = jax.random.uniform(k4, (C,), jnp.float32,
                                minval=-1.0 / math.sqrt(H), maxval=1.0 / math.sqrt(H))

    y = mlp_forward(x, w_fc, b_fc, w_proj, b_proj)
    jax.block_until_ready(y)

    y_ref = mlp_reference(x, w_fc, b_fc, w_proj, b_proj)
    assert y.shape == (B, T, C)
    # bf16 matmul operands with f32 accumulate -> loosened tolerance vs f32 ref.
    assert jnp.allclose(y, y_ref, atol=3e-2, rtol=3e-2), "mismatch vs reference"

    print("KERNEL_OK")
</pallas_src>

<mosaic_0001>
module attributes {stable_mosaic.version = 11 : i64} {
  func.func @mlp_kernel(%arg0: i32, %arg1: i32, %arg2: memref<256x32xbf16, #tpu.memory_space<vmem>>, %arg3: memref<32x128xbf16, #tpu.memory_space<vmem>>, %arg4: memref<1x128xf32, #tpu.memory_space<vmem>>, %arg5: memref<128x32xbf16, #tpu.memory_space<vmem>>, %arg6: memref<1x32xf32, #tpu.memory_space<vmem>>, %arg7: memref<256x32xf32, #tpu.memory_space<vmem>>, %arg8: memref<256x32xf32, #tpu.memory_space<vmem>>) attributes {dimension_semantics = [#tpu.dimension_semantics<parallel>, #tpu.dimension_semantics<arbitrary>], iteration_bounds = array<i64: 1, 1>, scalar_prefetch = 0 : i64, scratch_operands = 1 : i64, tpu.core_type = #tpu.core_type<tc>, window_params = [{transform_indices = @transform_0, window_bounds = array<i64: 256, 32>}, {transform_indices = @transform_1, window_bounds = array<i64: 32, 128>}, {transform_indices = @transform_2, window_bounds = array<i64: 1, 128>}, {transform_indices = @transform_3, window_bounds = array<i64: 128, 32>}, {pipeline_mode = #tpu.pipeline_mode<synchronous>, transform_indices = @transform_4, window_bounds = array<i64: 1, 32>}, {transform_indices = @transform_5, window_bounds = array<i64: 256, 32>}]} {
    %c0 = arith.constant 0 : index
    %c0_0 = arith.constant 0 : index
    %0 = vector.load %arg2[%c0, %c0_0] : memref<256x32xbf16, #tpu.memory_space<vmem>>, vector<256x32xbf16>
    %c0_1 = arith.constant 0 : index
    %c0_2 = arith.constant 0 : index
    %1 = vector.load %arg3[%c0_1, %c0_2] : memref<32x128xbf16, #tpu.memory_space<vmem>>, vector<32x128xbf16>
    %cst = arith.constant dense<0.000000e+00> : vector<256x128xf32>
    %2 = tpu.matmul %0, %1, %cst {dimension_numbers = #tpu.dot_dimension_numbers<[1], [0], [0], [1], [0, 0, 1, 1], [], []>} : vector<256x32xbf16>, vector<32x128xbf16>, vector<256x128xf32> -> vector<256x128xf32>
    %c0_3 = arith.constant 0 : index
    %c0_4 = arith.constant 0 : index
    %3 = vector.load %arg4[%c0_3, %c0_4] : memref<1x128xf32, #tpu.memory_space<vmem>>, vector<1x128xf32>
    %4 = vector.broadcast %3 : vector<1x128xf32> to vector<256x128xf32>
    %5 = arith.addf %2, %4 : vector<256x128xf32>
    %cst_5 = arith.constant 5.000000e-01 : f32
    %6 = vector.broadcast %cst_5 : f32 to vector<256x128xf32>
    %7 = arith.mulf %6, %5 : vector<256x128xf32>
    %cst_6 = arith.constant 4.471500e-02 : f32
    %8 = vector.broadcast %cst_6 : f32 to vector<256x128xf32>
    %9 = arith.mulf %8, %5 : vector<256x128xf32>
    %10 = arith.mulf %9, %5 : vector<256x128xf32>
    %11 = arith.mulf %10, %5 : vector<256x128xf32>
    %12 = arith.addf %5, %11 : vector<256x128xf32>
    %cst_7 = arith.constant 0.797884583 : f32
    %13 = vector.broadcast %cst_7 : f32 to vector<256x128xf32>
    %14 = arith.mulf %13, %12 : vector<256x128xf32>
    %15 = math.tanh %14 : vector<256x128xf32>
    %cst_8 = arith.constant 1.000000e+00 : f32
    %16 = vector.broadcast %cst_8 : f32 to vector<256x128xf32>
    %17 = arith.addf %16, %15 : vector<256x128xf32>
    %18 = arith.mulf %7, %17 : vector<256x128xf32>
    %19 = arith.truncf %18 : vector<256x128xf32> to vector<256x128xbf16>
    %c0_9 = arith.constant 0 : index
    %c0_10 = arith.constant 0 : index
    %20 = vector.load %arg5[%c0_9, %c0_10] : memref<128x32xbf16, #tpu.memory_space<vmem>>, vector<128x32xbf16>
    %cst_11 = arith.constant dense<0.000000e+00> : vector<256x32xf32>
    %21 = tpu.matmul %19, %20, %cst_11 {dimension_numbers = #tpu.dot_dimension_numbers<[1], [0], [0], [1], [0, 0, 1, 1], [], []>} : vector<256x128xbf16>, vector<128x32xbf16>, vector<256x32xf32> -> vector<256x32xf32>
    %c0_i32 = arith.constant 0 : i32
    %22 = arith.cmpi eq, %arg1, %c0_i32 : i32
    %23 = arith.extui %22 : i1 to i32
    %c0_i32_12 = arith.constant 0 : i32
    %24 = arith.cmpi ne, %23, %c0_i32_12 : i32
    scf.if %24 {
      %c0_17 = arith.constant 0 : index
      %c0_18 = arith.constant 0 : index
      %31 = vector.load %arg8[%c0_17, %c0_18] : memref<256x32xf32, #tpu.memory_space<vmem>>, vector<256x32xf32>
      tpu.vector_store %arg8[%c0_17, %c0_18], %21 {strides = array<i32>} : memref<256x32xf32, #tpu.memory_space<vmem>>, vector<256x32xf32>,
    } else {
    }
    %c0_i32_13 = arith.constant 0 : i32
    %25 = arith.cmpi ne, %arg1, %c0_i32_13 : i32
    %26 = arith.extui %25 : i1 to i32
    %c0_i32_14 = arith.constant 0 : i32
    %27 = arith.cmpi ne, %26, %c0_i32_14 : i32
    scf.if %27 {
      %c0_17 = arith.constant 0 : index
      %c0_18 = arith.constant 0 : index
      %31 = vector.load %arg8[%c0_17, %c0_18] : memref<256x32xf32, #tpu.memory_space<vmem>>, vector<256x32xf32>
      %32 = arith.addf %31, %21 : vector<256x32xf32>
      %c0_19 = arith.constant 0 : index
      %c0_20 = arith.constant 0 : index
      %33 = vector.load %arg8[%c0_19, %c0_20] : memref<256x32xf32, #tpu.memory_space<vmem>>, vector<256x32xf32>
      tpu.vector_store %arg8[%c0_19, %c0_20], %32 {strides = array<i32>} : memref<256x32xf32, #tpu.memory_space<vmem>>, vector<256x32xf32>,
    } else {
    }
    %c0_i32_15 = arith.constant 0 : i32
    %28 = arith.cmpi eq, %arg1, %c0_i32_15 : i32
    %29 = arith.extui %28 : i1 to i32
    %c0_i32_16 = arith.constant 0 : i32
    %30 = arith.cmpi ne, %29, %c0_i32_16 : i32
    scf.if %30 {
      %c0_17 = arith.constant 0 : index
      %c0_18 = arith.constant 0 : index
      %31 = vector.load %arg8[%c0_17, %c0_18] : memref<256x32xf32, #tpu.memory_space<vmem>>, vector<256x32xf32>
      %c0_19 = arith.constant 0 : index
      %c0_20 = arith.constant 0 : index
      %32 = vector.load %arg6[%c0_19, %c0_20] : memref<1x32xf32, #tpu.memory_space<vmem>>, vector<1x32xf32>
      %33 = vector.broadcast %32 : vector<1x32xf32> to vector<256x32xf32>
      %34 = arith.addf %31, %33 : vector<256x32xf32>
      %c0_21 = arith.constant 0 : index
      %c0_22 = arith.constant 0 : index
      %35 = vector.load %arg7[%c0_21, %c0_22] : memref<256x32xf32, #tpu.memory_space<vmem>>, vector<256x32xf32>
      tpu.vector_store %arg7[%c0_21, %c0_22], %34 {strides = array<i32>} : memref<256x32xf32, #tpu.memory_space<vmem>>, vector<256x32xf32>,
    } else {
    }
    return
  }
  func.func @transform_0(%arg0: i32, %arg1: i32) -> (i32, i32) {
    %c0_i32 = arith.constant 0 : i32
    %c0_i32_0 = arith.constant 0 : i32
    return %arg0, %c0_i32 : i32, i32
  }
  func.func @transform_1(%arg0: i32, %arg1: i32) -> (i32, i32) {
    %c0_i32 = arith.constant 0 : i32
    %c0_i32_0 = arith.constant 0 : i32
    return %c0_i32, %arg1 : i32, i32
  }
  func.func @transform_2(%arg0: i32, %arg1: i32) -> (i32, i32) {
    %c0_i32 = arith.constant 0 : i32
    %c0_i32_0 = arith.constant 0 : i32
    return %c0_i32, %arg1 : i32, i32
  }
  func.func @transform_3(%arg0: i32, %arg1: i32) -> (i32, i32) {
    %c0_i32 = arith.constant 0 : i32
    %c0_i32_0 = arith.constant 0 : i32
    return %arg1, %c0_i32 : i32, i32
  }
  func.func @transform_4(%arg0: i32, %arg1: i32) -> (i32, i32) {
    %c0_i32 = arith.constant 0 : i32
    %c0_i32_0 = arith.constant 0 : i32
    %c0_i32_1 = arith.constant 0 : i32
    return %c0_i32, %c0_i32_0 : i32, i32
  }
  func.func @transform_5(%arg0: i32, %arg1: i32) -> (i32, i32) {
    %c0_i32 = arith.constant 0 : i32
    %c0_i32_0 = arith.constant 0 : i32
    return %arg0, %c0_i32 : i32, i32
  }
}

</mosaic_0001>

<llo_original>
// kernel: tpu_custom_call.1
$region0: #{tpu_custom_call.1}
  #allocation0 [shape = 'u32[]', space=smem, size = 0x4, offset = 0x4, fixed_abs, tag = 'smem constant byte address 0x4 - core index']
  #allocation1 [shape = 'u32[144,128]{1,0:T(1,128)}', space=vmem, size = 0x12000, scoped, tag = 'internal scratch']
  #allocation2 [shape = 'f32[256,32]{1,0:T(8,128)}', space=vmem, size = 0x20000, scoped, tag = 'scratch operand']
  %s0 = inlined_call_operand.hbm [shape: bf16[256,32], index: 0, kind: input, shape index: {}]
  %s1 = inlined_call_operand.hbm [shape: bf16[32,128], index: 1, kind: input, shape index: {}]
  %s2 = inlined_call_operand.hbm [shape: f32[1,128], index: 2, kind: input, shape index: {}]
  %s3 = inlined_call_operand.hbm [shape: bf16[128,32], index: 3, kind: input, shape index: {}]
  %s4 = inlined_call_operand.hbm [shape: f32[1,32], index: 4, kind: input, shape index: {}]
  %s5 = inlined_call_operand.hbm [shape: f32[256,32], index: 5, kind: output, shape index: {}]
  %s6 = sld [smem:[#allocation0]]
  $region62: #{tpu_custom_call.1} parent=0
    _
  %s8 = ssub.s32 1, %s6
  %s9 = scalar_select 0, %s8, %s6
  $region1: #{tpu_custom_call.1} parent=0
    #allocation3 [shape = 'u8[65536]{0}', space=vmem, size = 0x10000, scoped, tag = 'input window, operand 0, single buffered']
    #allocation4 [shape = 's32[1]{0}', space=sflag, size = 0x4, scoped, tag = 'scoped memory for tpu_custom_call.1']
    #allocation5 [shape = 's32[1]{0}', space=sflag, size = 0x4, scoped, tag = 'scoped memory for tpu_custom_call.1']
    #allocation6 [shape = 'u8[8192]{0}', space=vmem, size = 0x2000, scoped, tag = 'input window, operand 1, single buffered']
    #allocation7 [shape = 's32[1]{0}', space=sflag, size = 0x4, scoped, tag = 'scoped memory for tpu_custom_call.1']
    #allocation8 [shape = 'u8[512]{0}', space=vmem, size = 0x400, scoped, tag = 'input window, operand 2, single buffered']
    #allocation9 [shape = 'u8[32768]{0}', space=vmem, size = 0x8000, scoped, tag = 'input window, operand 3, single buffered']
    #allocation10 [shape = 's32[1]{0}', space=sflag, size = 0x4, scoped, tag = 'scoped memory for tpu_custom_call.1']
    #allocation11 [shape = 'u8[512]{0}', space=vmem, size = 0x400, scoped, tag = 'input window, operand 4, single buffered']
    #allocation12 [shape = 'u8[131072]{0}', space=vmem, size = 0x20000, scoped, tag = 'output window, operand 0, single buffered']
    %10 = vsyncpa [#allocation4], 0
    %11 = vsyncpa [#allocation7], 0
    %12 = vsyncpa [#allocation10], 0
    %13 = vsyncpa [#allocation5], 0
    // Predicated region
    $region2: #{tpu_custom_call.1} parent=1 // pred_check
      _
    $region3: #{tpu_custom_call.1} parent=1 // pred_check_branch
      %15 = sbr.rel (0) target = $region5
    $region4: #{tpu_custom_call.1} parent=1 // pred_region
      %s17 = ssub.s32 2048, 2048
      %18 = vsyncadd [#allocation4], %s17
      %s19 = sshll.u32 [#allocation3], 4
      %s20 = int_to_ptr.vmem [resolvable:$true] %s19
      %25 = dma.hbm_to_vmem [thread:$0]  %s0, 2048, %s20, [#allocation4], 64, 64, 4
    $region5: #{tpu_custom_call.1} parent=1 // pred_fallthru
      _
    // Predicated region
    $region6: #{tpu_custom_call.1} parent=1 // pred_check
      _
    $region7: #{tpu_custom_call.1} parent=1 // pred_check_branch
      %27 = sbr.rel (0) target = $region9
    $region8: #{tpu_custom_call.1} parent=1 // pred_region
      %s29 = ssub.s32 256, 256
      %30 = vsyncadd [#allocation7], %s29
      %s31 = sshll.u32 [#allocation6], 4
      %s32 = int_to_ptr.vmem [resolvable:$true] %s31
      %37 = dma.hbm_to_vmem [thread:$0]  %s1, 256, %s32, [#allocation7], 64, 64, 4
    $region9: #{tpu_custom_call.1} parent=1 // pred_fallthru
      _
    // Predicated region
    $region10: #{tpu_custom_call.1} parent=1 // pred_check
      _
    $region11: #{tpu_custom_call.1} parent=1 // pred_check_branch
      %39 = sbr.rel (0) target = $region13
    $region12: #{tpu_custom_call.1} parent=1 // pred_region
      %s41 = ssub.s32 16, 16
      %42 = vsyncadd [#allocation7], %s41
      %s44 = sshll.u32 [#allocation8], 4
      %s45 = int_to_ptr.vmem [resolvable:$true] %s44
      %47 = dma.hbm_to_vmem [thread:$0]  %s2, 16, %s45, [#allocation7]
    $region13: #{tpu_custom_call.1} parent=1 // pred_fallthru
      _
    // Predicated region
    $region14: #{tpu_custom_call.1} parent=1 // pred_check
      _
    $region15: #{tpu_custom_call.1} parent=1 // pred_check_branch
      %49 = sbr.rel (0) target = $region17
    $region16: #{tpu_custom_call.1} parent=1 // pred_region
      %s51 = ssub.s32 1024, 1024
      %52 = vsyncadd [#allocation10], %s51
      %s53 = sshll.u32 [#allocation9], 4
      %s54 = int_to_ptr.vmem [resolvable:$true] %s53
      %59 = dma.hbm_to_vmem [thread:$0]  %s3, 1024, %s54, [#allocation10], 64, 64, 4
    $region17: #{tpu_custom_call.1} parent=1 // pred_fallthru
      _
    // Predicated region
    $region18: #{tpu_custom_call.1} parent=1 // pred_check
      _
    $region19: #{tpu_custom_call.1} parent=1 // pred_check_branch
      %61 = sbr.rel (0) target = $region21
    $region20: #{tpu_custom_call.1} parent=1 // pred_region
      %s63 = ssub.s32 16, 16
      %64 = vsyncadd [#allocation10], %s63
      %s66 = sshll.u32 [#allocation11], 4
      %s67 = int_to_ptr.vmem [resolvable:$true] %s66
      %69 = dma.hbm_to_vmem [thread:$0]  %s4, 16, %s67, [#allocation10]
    $region21: #{tpu_custom_call.1} parent=1 // pred_fallthru
      _
    // Predicated region
    $region22: #{tpu_custom_call.1} parent=1 // pred_check
      _
    $region23: #{tpu_custom_call.1} parent=1 // pred_check_branch
      %71 = sbr.rel (0) target = $region25
    $region24: #{tpu_custom_call.1} parent=1 // pred_region
      %72 = dma.done [#allocation4], 2048
    $region25: #{tpu_custom_call.1} parent=1 // pred_fallthru
      _
    // Predicated region
    $region26: #{tpu_custom_call.1} parent=1 // pred_check
      _
    $region27: #{tpu_custom_call.1} parent=1 // pred_check_branch
      %74 = sbr.rel (0) target = $region29
    $region28: #{tpu_custom_call.1} parent=1 // pred_region
      %75 = dma.done [#allocation7], 256
    $region29: #{tpu_custom_call.1} parent=1 // pred_fallthru
      _
    // Predicated region
    $region30: #{tpu_custom_call.1} parent=1 // pred_check
      _
    $region31: #{tpu_custom_call.1} parent=1 // pred_check_branch
      %77 = sbr.rel (0) target = $region33
    $region32: #{tpu_custom_call.1} parent=1 // pred_region
      %78 = dma.done [#allocation7], 16
    $region33: #{tpu_custom_call.1} parent=1 // pred_fallthru
      _
    // Predicated region
    $region34: #{tpu_custom_call.1} parent=1 // pred_check
      _
    $region35: #{tpu_custom_call.1} parent=1 // pred_check_branch
      %80 = sbr.rel (0) target = $region37
    $region36: #{tpu_custom_call.1} parent=1 // pred_region
      %81 = dma.done [#allocation10], 1024
    $region37: #{tpu_custom_call.1} parent=1 // pred_fallthru
      _
    // Predicated region
    $region38: #{tpu_custom_call.1} parent=1 // pred_check
      _
    $region39: #{tpu_custom_call.1} parent=1 // pred_check_branch
      %83 = sbr.rel (0) target = $region41
    $region40: #{tpu_custom_call.1} parent=1 // pred_region
      %84 = dma.done [#allocation10], 16
    $region41: #{tpu_custom_call.1} parent=1 // pred_fallthru
      _
    %v86 = vld [vmem:[#allocation3] sm:$0xf]
    %v87 = vld [vmem:[#allocation3 + $0x4] sm:$0xf]
    %v88 = vld [vmem:[#allocation3 + $0x8] sm:$0xf]
    %v89 = vld [vmem:[#allocation3 + $0xc] sm:$0xf]
    %v90 = vld [vmem:[#allocation3 + $0x10] sm:$0xf]
    %v91 = vld [vmem:[#allocation3 + $0x14] sm:$0xf]
    %v92 = vld [vmem:[#allocation3 + $0x18] sm:$0xf]
    %v93 = vld [vmem:[#allocation3 + $0x1c] sm:$0xf]
    %v94 = vld [vmem:[#allocation3 + $0x20] sm:$0xf]
    %v95 = vld [vmem:[#allocation3 + $0x24] sm:$0xf]
    %v96 = vld [vmem:[#allocation3 + $0x28] sm:$0xf]
    %v97 = vld [vmem:[#allocation3 + $0x2c] sm:$0xf]
    %v98 = vld [vmem:[#allocation3 + $0x30] sm:$0xf]
    %v99 = vld [vmem:[#allocation3 + $0x34] sm:$0xf]
    %v100 = vld [vmem:[#allocation3 + $0x38] sm:$0xf]
    %v101 = vld [vmem:[#allocation3 + $0x3c] sm:$0xf]
    %v102 = vld [vmem:[#allocation3 + $0x40] sm:$0xf]
    %v103 = vld [vmem:[#allocation3 + $0x44] sm:$0xf]
    %v104 = vld [vmem:[#allocation3 + $0x48] sm:$0xf]
    %v105 = vld [vmem:[#allocation3 + $0x4c] sm:$0xf]
    %v106 = vld [vmem:[#allocation3 + $0x50] sm:$0xf]
    %v107 = vld [vmem:[#allocation3 + $0x54] sm:$0xf]
    %v108 = vld [vmem:[#allocation3 + $0x58] sm:$0xf]
    %v109 = vld [vmem:[#allocation3 + $0x5c] sm:$0xf]
    %v110 = vld [vmem:[#allocation3 + $0x60] sm:$0xf]
    %v111 = vld [vmem:[#allocation3 + $0x64] sm:$0xf]
    %v112 = vld [vmem:[#allocation3 + $0x68] sm:$0xf]
    %v113 = vld [vmem:[#allocation3 + $0x6c] sm:$0xf]
    %v114 = vld [vmem:[#allocation3 + $0x70] sm:$0xf]
    %v115 = vld [vmem:[#allocation3 + $0x74] sm:$0xf]
    %v116 = vld [vmem:[#allocation3 + $0x78] sm:$0xf]
    %v117 = vld [vmem:[#allocation3 + $0x7c] sm:$0xf]
    %v118 = vld [vmem:[#allocation6] sm:$0xf]
    %v119 = vld [vmem:[#allocation6 + $0x4] sm:$0xf]
    %v120 = vld [vmem:[#allocation6 + $0x8] sm:$0xf]
    %v121 = vld [vmem:[#allocation6 + $0xc] sm:$0xf]
    %v122 = vld [vmem:[#allocation8] sm:$0x1]
    %v124 = vlaneseq
    %v125 = vshrl.u32 %v124, 7
    %v126 = vsub.s32 0, %v125
    %v127 = vrot.slane %v122, %v126
    %v161 = vunpack.c.l.b16 %v86
    %v162 = vunpack.c.l.b16 %v87
    %v163 = vunpack.c.l.b16 %v88
    %v164 = vunpack.c.l.b16 %v89
    %v165 = vunpack.c.l.b16 %v90
    %v166 = vunpack.c.l.b16 %v91
    %v167 = vunpack.c.l.b16 %v92
    %v168 = vunpack.c.l.b16 %v93
    %v169 = vunpack.c.l.b16 %v94
    %v170 = vunpack.c.l.b16 %v95
    %v171 = vunpack.c.l.b16 %v96
    %v172 = vunpack.c.l.b16 %v97
    %v173 = vunpack.c.l.b16 %v98
    %v174 = vunpack.c.l.b16 %v99
    %v175 = vunpack.c.l.b16 %v100
    %v176 = vunpack.c.l.b16 %v101
    %v177 = vunpack.c.l.b16 %v102
    %v178 = vunpack.c.l.b16 %v103
    %v179 = vunpack.c.l.b16 %v104
    %v180 = vunpack.c.l.b16 %v105
    %v181 = vunpack.c.l.b16 %v106
    %v182 = vunpack.c.l.b16 %v107
    %v183 = vunpack.c.l.b16 %v108
    %v184 = vunpack.c.l.b16 %v109
    %v185 = vunpack.c.l.b16 %v110
    %v186 = vunpack.c.l.b16 %v111
    %v187 = vunpack.c.l.b16 %v112
    %v188 = vunpack.c.l.b16 %v113
    %v189 = vunpack.c.l.b16 %v114
    %v190 = vunpack.c.l.b16 %v115
    %v191 = vunpack.c.l.b16 %v116
    %v192 = vunpack.c.l.b16 %v117
    %v193 = vpack.c.b16 %v162, %v161
    %v194 = vpack.c.b16 %v164, %v163
    %v195 = vpack.c.b16 %v166, %v165
    %v196 = vpack.c.b16 %v168, %v167
    %v197 = vpack.c.b16 %v170, %v169
    %v198 = vpack.c.b16 %v172, %v171
    %v199 = vpack.c.b16 %v174, %v173
    %v200 = vpack.c.b16 %v176, %v175
    %v201 = vpack.c.b16 %v178, %v177
    %v202 = vpack.c.b16 %v180, %v179
    %v203 = vpack.c.b16 %v182, %v181
    %v204 = vpack.c.b16 %v184, %v183
    %v205 = vpack.c.b16 %v186, %v185
    %v206 = vpack.c.b16 %v188, %v187
    %v207 = vpack.c.b16 %v190, %v189
    %v208 = vpack.c.b16 %v192, %v191
    %v213 = vunpack.c.l.b16 %v118
    %v214 = vunpack.c.l.b16 %v119
    %v215 = vunpack.c.l.b16 %v120
    %v216 = vunpack.c.l.b16 %v121
    %v217 = vpack.c.b16 %v214, %v213
    %v218 = vpack.c.b16 %v216, %v215
    %vm221 = vcmask 261120
    %v223 = vsel %vm221, %v193, 0
    %v226 = vsel %vm221, %v194, 0
    %v229 = vsel %vm221, %v195, 0
    %v232 = vsel %vm221, %v196, 0
    %v235 = vsel %vm221, %v197, 0
    %v238 = vsel %vm221, %v198, 0
    %v241 = vsel %vm221, %v199, 0
    %v244 = vsel %vm221, %v200, 0
    %v247 = vsel %vm221, %v201, 0
    %v250 = vsel %vm221, %v202, 0
    %v253 = vsel %vm221, %v203, 0
    %v256 = vsel %vm221, %v204, 0
    %v259 = vsel %vm221, %v205, 0
    %v262 = vsel %vm221, %v206, 0
    %v265 = vsel %vm221, %v207, 0
    %v268 = vsel %vm221, %v208, 0
    %270 = vmatprep.subr.bf16.mxu0 0
    %271 = vmatpush1.bf16.msra.mxu0 %v217
    %272 = vmatprep.subr.bf16.mxu0 0
    %273 = vmatpush1.bf16.msra.mxu0 %v218
    %274 = vmatprep.subr.bf16.mxu0 0
    %275 = vmatpush1.bf16.msra.mxu0 0
    %276 = vmatprep.subr.bf16.mxu0 0
    %277 = vmatpush1.bf16.msra.mxu0 0
    %278 = vmatprep.subr.bf16.mxu0 0
    %279 = vmatpush1.bf16.msra.mxu0 0
    %280 = vmatprep.subr.bf16.mxu0 0
    %281 = vmatpush1.bf16.msra.mxu0 0
    %282 = vmatprep.subr.bf16.mxu0 0
    %283 = vmatpush1.bf16.msra.mxu0 0
    %284 = vmatprep.subr.bf16.mxu0 0
    %285 = vmatpush1.bf16.msra.mxu0 0
    %286 = vmatprep.subr.bf16.mxu0 0
    %287 = vmatpush1.bf16.msra.mxu0 0
    %288 = vmatprep.subr.bf16.mxu0 0
    %289 = vmatpush1.bf16.msra.mxu0 0
    %290 = vmatprep.subr.bf16.mxu0 0
    %291 = vmatpush1.bf16.msra.mxu0 0
    %292 = vmatprep.subr.bf16.mxu0 0
    %293 = vmatpush1.bf16.msra.mxu0 0
    %294 = vmatprep.subr.bf16.mxu0 0
    %295 = vmatpush1.bf16.msra.mxu0 0
    %296 = vmatprep.subr.bf16.mxu0 0
    %297 = vmatpush1.bf16.msra.mxu0 0
    %298 = vmatprep.subr.bf16.mxu0 0
    %299 = vmatpush1.bf16.msra.mxu0 0
    %300 = vmatprep.subr.bf16.mxu0 0
    %301 = vmatpush1.bf16.msra.mxu0 0
    %302 = vmatprep.mubr.bf16.mxu0 0
    %303 = vmatmul.mubr.bf16.gmra.mrb[0].mxu0 %v223
    %v304 = vpop.f32.mrb[0].mxu0
    %v305 = vadd.f32 %v127, %v304
    %v306 = vpop.f32.mrb[0].mxu0
    %v307 = vpop.f32.mrb[0].mxu0
    %v308 = vadd.f32 %v127, %v307
    %v309 = vpop.f32.mrb[0].mxu0
    %310 = vmatprep.mubr.bf16.mxu0 0
    %311 = vmatmul.mubr.bf16.gmra.mrb[0].mxu0 %v226
    %v312 = vpop.f32.mrb[0].mxu0
    %v313 = vadd.f32 %v127, %v312
    %v314 = vpop.f32.mrb[0].mxu0
    %v315 = vpop.f32.mrb[0].mxu0
    %v316 = vadd.f32 %v127, %v315
    %v317 = vpop.f32.mrb[0].mxu0
    %318 = vmatprep.mubr.bf16.mxu0 0
    %319 = vmatmul.mubr.bf16.gmra.mrb[0].mxu0 %v229
    %v320 = vpop.f32.mrb[0].mxu0
    %v321 = vadd.f32 %v127, %v320
    %v322 = vpop.f32.mrb[0].mxu0
    %v323 = vpop.f32.mrb[0].mxu0
    %v324 = vadd.f32 %v127, %v323
    %v325 = vpop.f32.mrb[0].mxu0
    %326 = vmatprep.mubr.bf16.mxu0 0
    %327 = vmatmul.mubr.bf16.gmra.mrb[0].mxu0 %v232
    %v328 = vpop.f32.mrb[0].mxu0
    %v329 = vadd.f32 %v127, %v328
    %v330 = vpop.f32.mrb[0].mxu0
    %v331 = vpop.f32.mrb[0].mxu0
    %v332 = vadd.f32 %v127, %v331
    %v333 = vpop.f32.mrb[0].mxu0
    %334 = vmatprep.mubr.bf16.mxu0 0
    %335 = vmatmul.mubr.bf16.gmra.mrb[0].mxu0 %v235
    %v336 = vpop.f32.mrb[0].mxu0
    %v337 = vadd.f32 %v127, %v336
    %v338 = vpop.f32.mrb[0].mxu0
    %v339 = vpop.f32.mrb[0].mxu0
    %v340 = vadd.f32 %v127, %v339
    %v341 = vpop.f32.mrb[0].mxu0
    %342 = vmatprep.mubr.bf16.mxu0 0
    %343 = vmatmul.mubr.bf16.gmra.mrb[0].mxu0 %v238
    %v344 = vpop.f32.mrb[0].mxu0
    %v345 = vadd.f32 %v127, %v344
    %v346 = vpop.f32.mrb[0].mxu0
    %v347 = vpop.f32.mrb[0].mxu0
    %v348 = vadd.f32 %v127, %v347
    %v349 = vpop.f32.mrb[0].mxu0
    %350 = vmatprep.mubr.bf16.mxu0 0
    %351 = vmatmul.mubr.bf16.gmra.mrb[0].mxu0 %v241
    %v352 = vpop.f32.mrb[0].mxu0
    %v353 = vadd.f32 %v127, %v352
    %v354 = vpop.f32.mrb[0].mxu0
    %v355 = vpop.f32.mrb[0].mxu0
    %v356 = vadd.f32 %v127, %v355
    %v357 = vpop.f32.mrb[0].mxu0
    %358 = vmatprep.mubr.bf16.mxu0 0
    %359 = vmatmul.mubr.bf16.gmra.mrb[0].mxu0 %v244
    %v360 = vpop.f32.mrb[0].mxu0
    %v361 = vadd.f32 %v127, %v360
    %v362 = vpop.f32.mrb[0].mxu0
    %v363 = vpop.f32.mrb[0].mxu0
    %v364 = vadd.f32 %v127, %v363
    %v365 = vpop.f32.mrb[0].mxu0
    %366 = vmatprep.mubr.bf16.mxu0 0
    %367 = vmatmul.mubr.bf16.gmra.mrb[0].mxu0 %v247
    %v368 = vpop.f32.mrb[0].mxu0
    %v369 = vadd.f32 %v127, %v368
    %v370 = vpop.f32.mrb[0].mxu0
    %v371 = vpop.f32.mrb[0].mxu0
    %v372 = vadd.f32 %v127, %v371
    %v373 = vpop.f32.mrb[0].mxu0
    %374 = vmatprep.mubr.bf16.mxu0 0
    %375 = vmatmul.mubr.bf16.gmra.mrb[0].mxu0 %v250
    %v376 = vpop.f32.mrb[0].mxu0
    %v377 = vadd.f32 %v127, %v376
    %v378 = vpop.f32.mrb[0].mxu0
    %v379 = vpop.f32.mrb[0].mxu0
    %v380 = vadd.f32 %v127, %v379
    %v381 = vpop.f32.mrb[0].mxu0
    %382 = vmatprep.mubr.bf16.mxu0 0
    %383 = vmatmul.mubr.bf16.gmra.mrb[0].mxu0 %v253
    %v384 = vpop.f32.mrb[0].mxu0
    %v385 = vadd.f32 %v127, %v384
    %v386 = vpop.f32.mrb[0].mxu0
    %v387 = vpop.f32.mrb[0].mxu0
    %v388 = vadd.f32 %v127, %v387
    %v389 = vpop.f32.mrb[0].mxu0
    %390 = vmatprep.mubr.bf16.mxu0 0
    %391 = vmatmul.mubr.bf16.gmra.mrb[0].mxu0 %v256
    %v392 = vpop.f32.mrb[0].mxu0
    %v393 = vadd.f32 %v127, %v392
    %v394 = vpop.f32.mrb[0].mxu0
    %v395 = vpop.f32.mrb[0].mxu0
    %v396 = vadd.f32 %v127, %v395
    %v397 = vpop.f32.mrb[0].mxu0
    %398 = vmatprep.mubr.bf16.mxu0 0
    %399 = vmatmul.mubr.bf16.gmra.mrb[0].mxu0 %v259
    %v400 = vpop.f32.mrb[0].mxu0
    %v401 = vadd.f32 %v127, %v400
    %v402 = vpop.f32.mrb[0].mxu0
    %v403 = vpop.f32.mrb[0].mxu0
    %v404 = vadd.f32 %v127, %v403
    %v405 = vpop.f32.mrb[0].mxu0
    %406 = vmatprep.mubr.bf16.mxu0 0
    %407 = vmatmul.mubr.bf16.gmra.mrb[0].mxu0 %v262
    %v408 = vpop.f32.mrb[0].mxu0
    %v409 = vadd.f32 %v127, %v408
    %v410 = vpop.f32.mrb[0].mxu0
    %v411 = vpop.f32.mrb[0].mxu0
    %v412 = vadd.f32 %v127, %v411
    %v413 = vpop.f32.mrb[0].mxu0
    %414 = vmatprep.mubr.bf16.mxu0 0
    %415 = vmatmul.mubr.bf16.gmra.mrb[0].mxu0 %v265
    %v416 = vpop.f32.mrb[0].mxu0
    %v417 = vadd.f32 %v127, %v416
    %v418 = vpop.f32.mrb[0].mxu0
    %v419 = vpop.f32.mrb[0].mxu0
    %v420 = vadd.f32 %v127, %v419
    %v421 = vpop.f32.mrb[0].mxu0
    %422 = vmatprep.mubr.bf16.mxu0 0
    %423 = vmatmul.mubr.bf16.gmra.mrb[0].mxu0 %v268
    %v424 = vpop.f32.mrb[0].mxu0
    %v425 = vadd.f32 %v127, %v424
    %v426 = vpop.f32.mrb[0].mxu0
    %v427 = vpop.f32.mrb[0].mxu0
    %v428 = vadd.f32 %v127, %v427
    %v429 = vpop.f32.mrb[0].mxu0
    %430 = vdwg.mxu0
    %v431 = vmul.f32 %v305, 0.5
    %v432 = vmul.f32 %v308, 0.5
    %v433 = vmul.f32 %v313, 0.5
    %v434 = vmul.f32 %v316, 0.5
    %v435 = vmul.f32 %v321, 0.5
    %v436 = vmul.f32 %v324, 0.5
    %v437 = vmul.f32 %v329, 0.5
    %v438 = vmul.f32 %v332, 0.5
    %v439 = vmul.f32 %v337, 0.5
    %v440 = vmul.f32 %v340, 0.5
    %v441 = vmul.f32 %v345, 0.5
    %v442 = vmul.f32 %v348, 0.5
    %v443 = vmul.f32 %v353, 0.5
    %v444 = vmul.f32 %v356, 0.5
    %v445 = vmul.f32 %v361, 0.5
    %v446 = vmul.f32 %v364, 0.5
    %v447 = vmul.f32 %v369, 0.5
    %v448 = vmul.f32 %v372, 0.5
    %v449 = vmul.f32 %v377, 0.5
    %v450 = vmul.f32 %v380, 0.5
    %v451 = vmul.f32 %v385, 0.5
    %v452 = vmul.f32 %v388, 0.5
    %v453 = vmul.f32 %v393, 0.5
    %v454 = vmul.f32 %v396, 0.5
    %v455 = vmul.f32 %v401, 0.5
    %v456 = vmul.f32 %v404, 0.5
    %v457 = vmul.f32 %v409, 0.5
    %v458 = vmul.f32 %v412, 0.5
    %v459 = vmul.f32 %v417, 0.5
    %v460 = vmul.f32 %v420, 0.5
    %v461 = vmul.f32 %v425, 0.5
    %v462 = vmul.f32 %v428, 0.5
    %v463 = vmul.f32 %v305, 0.044715
    %v464 = vmul.f32 %v308, 0.044715
    %v465 = vmul.f32 %v313, 0.044715
    %v466 = vmul.f32 %v316, 0.044715
    %v467 = vmul.f32 %v321, 0.044715
    %v468 = vmul.f32 %v324, 0.044715
    %v469 = vmul.f32 %v329, 0.044715
    %v470 = vmul.f32 %v332, 0.044715
    %v471 = vmul.f32 %v337, 0.044715
    %v472 = vmul.f32 %v340, 0.044715
    %v473 = vmul.f32 %v345, 0.044715
    %v474 = vmul.f32 %v348, 0.044715
    %v475 = vmul.f32 %v353, 0.044715
    %v476 = vmul.f32 %v356, 0.044715
    %v477 = vmul.f32 %v361, 0.044715
    %v478 = vmul.f32 %v364, 0.044715
    %v479 = vmul.f32 %v369, 0.044715
    %v480 = vmul.f32 %v372, 0.044715
    %v481 = vmul.f32 %v377, 0.044715
    %v482 = vmul.f32 %v380, 0.044715
    %v483 = vmul.f32 %v385, 0.044715
    %v484 = vmul.f32 %v388, 0.044715
    %v485 = vmul.f32 %v393, 0.044715
    %v486 = vmul.f32 %v396, 0.044715
    %v487 = vmul.f32 %v401, 0.044715
    %v488 = vmul.f32 %v404, 0.044715
    %v489 = vmul.f32 %v409, 0.044715
    %v490 = vmul.f32 %v412, 0.044715
    %v491 = vmul.f32 %v417, 0.044715
    %v492 = vmul.f32 %v420, 0.044715
    %v493 = vmul.f32 %v425, 0.044715
    %v494 = vmul.f32 %v428, 0.044715
    %v495 = vmul.f32 %v463, %v305
    %v496 = vmul.f32 %v464, %v308
    %v497 = vmul.f32 %v465, %v313
    %v498 = vmul.f32 %v466, %v316
    %v499 = vmul.f32 %v467, %v321
    %v500 = vmul.f32 %v468, %v324
    %v501 = vmul.f32 %v469, %v329
    %v502 = vmul.f32 %v470, %v332
    %v503 = vmul.f32 %v471, %v337
    %v504 = vmul.f32 %v472, %v340
    %v505 = vmul.f32 %v473, %v345
    %v506 = vmul.f32 %v474, %v348
    %v507 = vmul.f32 %v475, %v353
    %v508 = vmul.f32 %v476, %v356
    %v509 = vmul.f32 %v477, %v361
    %v510 = vmul.f32 %v478, %v364
    %v511 = vmul.f32 %v479, %v369
    %v512 = vmul.f32 %v480, %v372
    %v513 = vmul.f32 %v481, %v377
    %v514 = vmul.f32 %v482, %v380
    %v515 = vmul.f32 %v483, %v385
    %v516 = vmul.f32 %v484, %v388
    %v517 = vmul.f32 %v485, %v393
    %v518 = vmul.f32 %v486, %v396
    %v519 = vmul.f32 %v487, %v401
    %v520 = vmul.f32 %v488, %v404
    %v521 = vmul.f32 %v489, %v409
    %v522 = vmul.f32 %v490, %v412
    %v523 = vmul.f32 %v491, %v417
    %v524 = vmul.f32 %v492, %v420
    %v525 = vmul.f32 %v493, %v425
    %v526 = vmul.f32 %v494, %v428
    %v527 = vmul.f32 %v495, %v305
    %v528 = vmul.f32 %v496, %v308
    %v529 = vmul.f32 %v497, %v313
    %v530 = vmul.f32 %v498, %v316
    %v531 = vmul.f32 %v499, %v321
    %v532 = vmul.f32 %v500, %v324
    %v533 = vmul.f32 %v501, %v329
    %v534 = vmul.f32 %v502, %v332
    %v535 = vmul.f32 %v503, %v337
    %v536 = vmul.f32 %v504, %v340
    %v537 = vmul.f32 %v505, %v345
    %v538 = vmul.f32 %v506, %v348
    %v539 = vmul.f32 %v507, %v353
    %v540 = vmul.f32 %v508, %v356
    %v541 = vmul.f32 %v509, %v361
    %v542 = vmul.f32 %v510, %v364
    %v543 = vmul.f32 %v511, %v369
    %v544 = vmul.f32 %v512, %v372
    %v545 = vmul.f32 %v513, %v377
    %v546 = vmul.f32 %v514, %v380
    %v547 = vmul.f32 %v515, %v385
    %v548 = vmul.f32 %v516, %v388
    %v549 = vmul.f32 %v517, %v393
    %v550 = vmul.f32 %v518, %v396
    %v551 = vmul.f32 %v519, %v401
    %v552 = vmul.f32 %v520, %v404
    %v553 = vmul.f32 %v521, %v409
    %v554 = vmul.f32 %v522, %v412
    %v555 = vmul.f32 %v523, %v417
    %v556 = vmul.f32 %v524, %v420
    %v557 = vmul.f32 %v525, %v425
    %v558 = vmul.f32 %v526, %v428
    %v559 = vadd.f32 %v305, %v527
    %v560 = vadd.f32 %v308, %v528
    %v561 = vadd.f32 %v313, %v529
    %v562 = vadd.f32 %v316, %v530
    %v563 = vadd.f32 %v321, %v531
    %v564 = vadd.f32 %v324, %v532
    %v565 = vadd.f32 %v329, %v533
    %v566 = vadd.f32 %v332, %v534
    %v567 = vadd.f32 %v337, %v535
    %v568 = vadd.f32 %v340, %v536
    %v569 = vadd.f32 %v345, %v537
    %v570 = vadd.f32 %v348, %v538
    %v571 = vadd.f32 %v353, %v539
    %v572 = vadd.f32 %v356, %v540
    %v573 = vadd.f32 %v361, %v541
    %v574 = vadd.f32 %v364, %v542
    %v575 = vadd.f32 %v369, %v543
    %v576 = vadd.f32 %v372, %v544
    %v577 = vadd.f32 %v377, %v545
    %v578 = vadd.f32 %v380, %v546
    %v579 = vadd.f32 %v385, %v547
    %v580 = vadd.f32 %v388, %v548
    %v581 = vadd.f32 %v393, %v549
    %v582 = vadd.f32 %v396, %v550
    %v583 = vadd.f32 %v401, %v551
    %v584 = vadd.f32 %v404, %v552
    %v585 = vadd.f32 %v409, %v553
    %v586 = vadd.f32 %v412, %v554
    %v587 = vadd.f32 %v417, %v555
    %v588 = vadd.f32 %v420, %v556
    %v589 = vadd.f32 %v425, %v557
    %v590 = vadd.f32 %v428, %v558
    %v591 = vmul.f32 %v559, 0.7978846
    %v592 = vmul.f32 %v560, 0.7978846
    %v593 = vmul.f32 %v561, 0.7978846
    %v594 = vmul.f32 %v562, 0.7978846
    %v595 = vmul.f32 %v563, 0.7978846
    %v596 = vmul.f32 %v564, 0.7978846
    %v597 = vmul.f32 %v565, 0.7978846
    %v598 = vmul.f32 %v566, 0.7978846
    %v599 = vmul.f32 %v567, 0.7978846
    %v600 = vmul.f32 %v568, 0.7978846
    %v601 = vmul.f32 %v569, 0.7978846
    %v602 = vmul.f32 %v570, 0.7978846
    %v603 = vmul.f32 %v571, 0.7978846
    %v604 = vmul.f32 %v572, 0.7978846
    %v605 = vmul.f32 %v573, 0.7978846
    %v606 = vmul.f32 %v574, 0.7978846
    %v607 = vmul.f32 %v575, 0.7978846
    %v608 = vmul.f32 %v576, 0.7978846
    %v609 = vmul.f32 %v577, 0.7978846
    %v610 = vmul.f32 %v578, 0.7978846
    %v611 = vmul.f32 %v579, 0.7978846
    %v612 = vmul.f32 %v580, 0.7978846
    %v613 = vmul.f32 %v581, 0.7978846
    %v614 = vmul.f32 %v582, 0.7978846
    %v615 = vmul.f32 %v583, 0.7978846
    %v616 = vmul.f32 %v584, 0.7978846
    %v617 = vmul.f32 %v585, 0.7978846
    %v618 = vmul.f32 %v586, 0.7978846
    %v619 = vmul.f32 %v587, 0.7978846
    %v620 = vmul.f32 %v588, 0.7978846
    %v621 = vmul.f32 %v589, 0.7978846
    %v622 = vmul.f32 %v590, 0.7978846
    %v623 = vtanh.pop %v591
    %v624 = vtanh.pop %v592
    %v625 = vtanh.pop %v593
    %v626 = vtanh.pop %v594
    %v627 = vtanh.pop %v595
    %v628 = vtanh.pop %v596
    %v629 = vtanh.pop %v597
    %v630 = vtanh.pop %v598
    %v631 = vtanh.pop %v599
    %v632 = vtanh.pop %v600
    %v633 = vtanh.pop %v601
    %v634 = vtanh.pop %v602
    %v635 = vtanh.pop %v603
    %v636 = vtanh.pop %v604
    %v637 = vtanh.pop %v605
    %v638 = vtanh.pop %v606
    %v639 = vtanh.pop %v607
    %v640 = vtanh.pop %v608
    %v641 = vtanh.pop %v609
    %v642 = vtanh.pop %v610
    %v643 = vtanh.pop %v611
    %v644 = vtanh.pop %v612
    %v645 = vtanh.pop %v613
    %v646 = vtanh.pop %v614
    %v647 = vtanh.pop %v615
    %v648 = vtanh.pop %v616
    %v649 = vtanh.pop %v617
    %v650 = vtanh.pop %v618
    %v651 = vtanh.pop %v619
    %v652 = vtanh.pop %v620
    %v653 = vtanh.pop %v621
    %v654 = vtanh.pop %v622
    %v655 = vadd.f32 %v623, 1.0
    %v656 = vadd.f32 %v624, 1.0
    %v657 = vadd.f32 %v625, 1.0
    %v658 = vadd.f32 %v626, 1.0
    %v659 = vadd.f32 %v627, 1.0
    %v660 = vadd.f32 %v628, 1.0
    %v661 = vadd.f32 %v629, 1.0
    %v662 = vadd.f32 %v630, 1.0
    %v663 = vadd.f32 %v631, 1.0
    %v664 = vadd.f32 %v632, 1.0
    %v665 = vadd.f32 %v633, 1.0
    %v666 = vadd.f32 %v634, 1.0
    %v667 = vadd.f32 %v635, 1.0
    %v668 = vadd.f32 %v636, 1.0
    %v669 = vadd.f32 %v637, 1.0
    %v670 = vadd.f32 %v638, 1.0
    %v671 = vadd.f32 %v639, 1.0
    %v672 = vadd.f32 %v640, 1.0
    %v673 = vadd.f32 %v641, 1.0
    %v674 = vadd.f32 %v642, 1.0
    %v675 = vadd.f32 %v643, 1.0
    %v676 = vadd.f32 %v644, 1.0
    %v677 = vadd.f32 %v645, 1.0
    %v678 = vadd.f32 %v646, 1.0
    %v679 = vadd.f32 %v647, 1.0
    %v680 = vadd.f32 %v648, 1.0
    %v681 = vadd.f32 %v649, 1.0
    %v682 = vadd.f32 %v650, 1.0
    %v683 = vadd.f32 %v651, 1.0
    %v684 = vadd.f32 %v652, 1.0
    %v685 = vadd.f32 %v653, 1.0
    %v686 = vadd.f32 %v654, 1.0
    %v687 = vmul.f32 %v431, %v655
    %v688 = vmul.f32 %v432, %v656
    %v689 = vmul.f32 %v433, %v657
    %v690 = vmul.f32 %v434, %v658
    %v691 = vmul.f32 %v435, %v659
    %v692 = vmul.f32 %v436, %v660
    %v693 = vmul.f32 %v437, %v661
    %v694 = vmul.f32 %v438, %v662
    %v695 = vmul.f32 %v439, %v663
    %v696 = vmul.f32 %v440, %v664
    %v697 = vmul.f32 %v441, %v665
    %v698 = vmul.f32 %v442, %v666
    %v699 = vmul.f32 %v443, %v667
    %v700 = vmul.f32 %v444, %v668
    %v701 = vmul.f32 %v445, %v669
    %v702 = vmul.f32 %v446, %v670
    %v703 = vmul.f32 %v447, %v671
    %v704 = vmul.f32 %v448, %v672
    %v705 = vmul.f32 %v449, %v673
    %v706 = vmul.f32 %v450, %v674
    %v707 = vmul.f32 %v451, %v675
    %v708 = vmul.f32 %v452, %v676
    %v709 = vmul.f32 %v453, %v677
    %v710 = vmul.f32 %v454, %v678
    %v711 = vmul.f32 %v455, %v679
    %v712 = vmul.f32 %v456, %v680
    %v713 = vmul.f32 %v457, %v681
    %v714 = vmul.f32 %v458, %v682
    %v715 = vmul.f32 %v459, %v683
    %v716 = vmul.f32 %v460, %v684
    %v717 = vmul.f32 %v461, %v685
    %v718 = vmul.f32 %v462, %v686
    %v719 = vpack.c.bf16 %v688, %v687
    %v720 = vpack.c.bf16 %v690, %v689
    %v721 = vpack.c.bf16 %v692, %v691
    %v722 = vpack.c.bf16 %v694, %v693
    %v723 = vpack.c.bf16 %v696, %v695
    %v724 = vpack.c.bf16 %v698, %v697
    %v725 = vpack.c.bf16 %v700, %v699
    %v726 = vpack.c.bf16 %v702, %v701
    %v727 = vpack.c.bf16 %v704, %v703
    %v728 = vpack.c.bf16 %v706, %v705
    %v729 = vpack.c.bf16 %v708, %v707
    %v730 = vpack.c.bf16 %v710, %v709
    %v731 = vpack.c.bf16 %v712, %v711
    %v732 = vpack.c.bf16 %v714, %v713
    %v733 = vpack.c.bf16 %v716, %v715
    %v734 = vpack.c.bf16 %v718, %v717
    %v735 = vld [vmem:[#allocation9] sm:$0xf]
    %v736 = vld [vmem:[#allocation9 + $0x4] sm:$0xf]
    %v737 = vld [vmem:[#allocation9 + $0x8] sm:$0xf]
    %v738 = vld [vmem:[#allocation9 + $0xc] sm:$0xf]
    %v739 = vld [vmem:[#allocation9 + $0x10] sm:$0xf]
    %v740 = vld [vmem:[#allocation9 + $0x14] sm:$0xf]
    %v741 = vld [vmem:[#allocation9 + $0x18] sm:$0xf]
    %v742 = vld [vmem:[#allocation9 + $0x1c] sm:$0xf]
    %v743 = vld [vmem:[#allocation9 + $0x20] sm:$0xf]
    %v744 = vld [vmem:[#allocation9 + $0x24] sm:$0xf]
    %v745 = vld [vmem:[#allocation9 + $0x28] sm:$0xf]
    %v746 = vld [vmem:[#allocation9 + $0x2c] sm:$0xf]
    %v747 = vld [vmem:[#allocation9 + $0x30] sm:$0xf]
    %v748 = vld [vmem:[#allocation9 + $0x34] sm:$0xf]
    %v749 = vld [vmem:[#allocation9 + $0x38] sm:$0xf]
    %v750 = vld [vmem:[#allocation9 + $0x3c] sm:$0xf]
    %v767 = vunpack.c.l.b16 %v735
    %v768 = vunpack.c.l.b16 %v736
    %v769 = vunpack.c.l.b16 %v737
    %v770 = vunpack.c.l.b16 %v738
    %v771 = vunpack.c.l.b16 %v739
    %v772 = vunpack.c.l.b16 %v740
    %v773 = vunpack.c.l.b16 %v741
    %v774 = vunpack.c.l.b16 %v742
    %v775 = vunpack.c.l.b16 %v743
    %v776 = vunpack.c.l.b16 %v744
    %v777 = vunpack.c.l.b16 %v745
    %v778 = vunpack.c.l.b16 %v746
    %v779 = vunpack.c.l.b16 %v747
    %v780 = vunpack.c.l.b16 %v748
    %v781 = vunpack.c.l.b16 %v749
    %v782 = vunpack.c.l.b16 %v750
    %v783 = vpack.c.b16 %v768, %v767
    %v784 = vpack.c.b16 %v770, %v769
    %v785 = vpack.c.b16 %v772, %v771
    %v786 = vpack.c.b16 %v774, %v773
    %v787 = vpack.c.b16 %v776, %v775
    %v788 = vpack.c.b16 %v778, %v777
    %v789 = vpack.c.b16 %v780, %v779
    %v790 = vpack.c.b16 %v782, %v781
    %799 = vmatprep.subr.bf16.mxu0 0
    %800 = vmatpush1.bf16.msra.mxu0 %v783
    %801 = vmatprep.subr.bf16.mxu0 0
    %802 = vmatpush1.bf16.msra.mxu0 %v784
    %803 = vmatprep.subr.bf16.mxu0 0
    %804 = vmatpush1.bf16.msra.mxu0 %v785
    %805 = vmatprep.subr.bf16.mxu0 0
    %806 = vmatpush1.bf16.msra.mxu0 %v786
    %807 = vmatprep.subr.bf16.mxu0 0
    %808 = vmatpush1.bf16.msra.mxu0 %v787
    %809 = vmatprep.subr.bf16.mxu0 0
    %810 = vmatpush1.bf16.msra.mxu0 %v788
    %811 = vmatprep.subr.bf16.mxu0 0
    %812 = vmatpush1.bf16.msra.mxu0 %v789
    %813 = vmatprep.subr.bf16.mxu0 0
    %814 = vmatpush1.bf16.msra.mxu0 %v790
    %815 = vmatprep.subr.bf16.mxu0 0
    %816 = vmatpush1.bf16.msra.mxu0 0
    %817 = vmatprep.subr.bf16.mxu0 0
    %818 = vmatpush1.bf16.msra.mxu0 0
    %819 = vmatprep.subr.bf16.mxu0 0
    %820 = vmatpush1.bf16.msra.mxu0 0
    %821 = vmatprep.subr.bf16.mxu0 0
    %822 = vmatpush1.bf16.msra.mxu0 0
    %823 = vmatprep.subr.bf16.mxu0 0
    %824 = vmatpush1.bf16.msra.mxu0 0
    %825 = vmatprep.subr.bf16.mxu0 0
    %826 = vmatpush1.bf16.msra.mxu0 0
    %827 = vmatprep.subr.bf16.mxu0 0
    %828 = vmatpush1.bf16.msra.mxu0 0
    %829 = vmatprep.subr.bf16.mxu0 0
    %830 = vmatpush1.bf16.msra.mxu0 0
    %831 = vmatprep.mubr.bf16.mxu0 0
    %832 = vmatmul.mubr.bf16.gmra.mrb[0].mxu0 %v719
    %v833 = vpop.f32.mrb[0].mxu0
    %v834 = vadd.f32 0.0, %v833
    %v835 = vpop.f32.mrb[0].mxu0
    %v836 = vpop.f32.mrb[0].mxu0
    %v837 = vadd.f32 0.0, %v836
    %v838 = vpop.f32.mrb[0].mxu0
    %839 = vmatprep.mubr.bf16.mxu0 0
    %840 = vmatmul.mubr.bf16.gmra.mrb[0].mxu0 %v720
    %v841 = vpop.f32.mrb[0].mxu0
    %v842 = vadd.f32 0.0, %v841
    %v843 = vpop.f32.mrb[0].mxu0
    %v844 = vpop.f32.mrb[0].mxu0
    %v845 = vadd.f32 0.0, %v844
    %v846 = vpop.f32.mrb[0].mxu0
    %847 = vmatprep.mubr.bf16.mxu0 0
    %848 = vmatmul.mubr.bf16.gmra.mrb[0].mxu0 %v721
    %v849 = vpop.f32.mrb[0].mxu0
    %v850 = vadd.f32 0.0, %v849
    %v851 = vpop.f32.mrb[0].mxu0
    %v852 = vpop.f32.mrb[0].mxu0
    %v853 = vadd.f32 0.0, %v852
    %v854 = vpop.f32.mrb[0].mxu0
    %855 = vmatprep.mubr.bf16.mxu0 0
    %856 = vmatmul.mubr.bf16.gmra.mrb[0].mxu0 %v722
    %v857 = vpop.f32.mrb[0].mxu0
    %v858 = vadd.f32 0.0, %v857
    %v859 = vpop.f32.mrb[0].mxu0
    %v860 = vpop.f32.mrb[0].mxu0
    %v861 = vadd.f32 0.0, %v860
    %v862 = vpop.f32.mrb[0].mxu0
    %863 = vmatprep.mubr.bf16.mxu0 0
    %864 = vmatmul.mubr.bf16.gmra.mrb[0].mxu0 %v723
    %v865 = vpop.f32.mrb[0].mxu0
    %v866 = vadd.f32 0.0, %v865
    %v867 = vpop.f32.mrb[0].mxu0
    %v868 = vpop.f32.mrb[0].mxu0
    %v869 = vadd.f32 0.0, %v868
    %v870 = vpop.f32.mrb[0].mxu0
    %871 = vmatprep.mubr.bf16.mxu0 0
    %872 = vmatmul.mubr.bf16.gmra.mrb[0].mxu0 %v724
    %v873 = vpop.f32.mrb[0].mxu0
    %v874 = vadd.f32 0.0, %v873
    %v875 = vpop.f32.mrb[0].mxu0
    %v876 = vpop.f32.mrb[0].mxu0
    %v877 = vadd.f32 0.0, %v876
    %v878 = vpop.f32.mrb[0].mxu0
    %879 = vmatprep.mubr.bf16.mxu0 0
    %880 = vmatmul.mubr.bf16.gmra.mrb[0].mxu0 %v725
    %v881 = vpop.f32.mrb[0].mxu0
    %v882 = vadd.f32 0.0, %v881
    %v883 = vpop.f32.mrb[0].mxu0
    %v884 = vpop.f32.mrb[0].mxu0
    %v885 = vadd.f32 0.0, %v884
    %v886 = vpop.f32.mrb[0].mxu0
    %887 = vmatprep.mubr.bf16.mxu0 0
    %888 = vmatmul.mubr.bf16.gmra.mrb[0].mxu0 %v726
    %v889 = vpop.f32.mrb[0].mxu0
    %v890 = vadd.f32 0.0, %v889
    %v891 = vpop.f32.mrb[0].mxu0
    %v892 = vpop.f32.mrb[0].mxu0
    %v893 = vadd.f32 0.0, %v892
    %v894 = vpop.f32.mrb[0].mxu0
    %895 = vmatprep.mubr.bf16.mxu0 0
    %896 = vmatmul.mubr.bf16.gmra.mrb[0].mxu0 %v727
    %v897 = vpop.f32.mrb[0].mxu0
    %v898 = vadd.f32 0.0, %v897
    %v899 = vpop.f32.mrb[0].mxu0
    %v900 = vpop.f32.mrb[0].mxu0
    %v901 = vadd.f32 0.0, %v900
    %v902 = vpop.f32.mrb[0].mxu0
    %903 = vmatprep.mubr.bf16.mxu0 0
    %904 = vmatmul.mubr.bf16.gmra.mrb[0].mxu0 %v728
    %v905 = vpop.f32.mrb[0].mxu0
    %v906 = vadd.f32 0.0, %v905
    %v907 = vpop.f32.mrb[0].mxu0
    %v908 = vpop.f32.mrb[0].mxu0
    %v909 = vadd.f32 0.0, %v908
    %v910 = vpop.f32.mrb[0].mxu0
    %911 = vmatprep.mubr.bf16.mxu0 0
    %912 = vmatmul.mubr.bf16.gmra.mrb[0].mxu0 %v729
    %v913 = vpop.f32.mrb[0].mxu0
    %v914 = vadd.f32 0.0, %v913
    %v915 = vpop.f32.mrb[0].mxu0
    %v916 = vpop.f32.mrb[0].mxu0
    %v917 = vadd.f32 0.0, %v916
    %v918 = vpop.f32.mrb[0].mxu0
    %919 = vmatprep.mubr.bf16.mxu0 0
    %920 = vmatmul.mubr.bf16.gmra.mrb[0].mxu0 %v730
    %v921 = vpop.f32.mrb[0].mxu0
    %v922 = vadd.f32 0.0, %v921
    %v923 = vpop.f32.mrb[0].mxu0
    %v924 = vpop.f32.mrb[0].mxu0
    %v925 = vadd.f32 0.0, %v924
    %v926 = vpop.f32.mrb[0].mxu0
    %927 = vmatprep.mubr.bf16.mxu0 0
    %928 = vmatmul.mubr.bf16.gmra.mrb[0].mxu0 %v731
    %v929 = vpop.f32.mrb[0].mxu0
    %v930 = vadd.f32 0.0, %v929
    %v931 = vpop.f32.mrb[0].mxu0
    %v932 = vpop.f32.mrb[0].mxu0
    %v933 = vadd.f32 0.0, %v932
    %v934 = vpop.f32.mrb[0].mxu0
    %935 = vmatprep.mubr.bf16.mxu0 0
    %936 = vmatmul.mubr.bf16.gmra.mrb[0].mxu0 %v732
    %v937 = vpop.f32.mrb[0].mxu0
    %v938 = vadd.f32 0.0, %v937
    %v939 = vpop.f32.mrb[0].mxu0
    %v940 = vpop.f32.mrb[0].mxu0
    %v941 = vadd.f32 0.0, %v940
    %v942 = vpop.f32.mrb[0].mxu0
    %943 = vmatprep.mubr.bf16.mxu0 0
    %944 = vmatmul.mubr.bf16.gmra.mrb[0].mxu0 %v733
    %v945 = vpop.f32.mrb[0].mxu0
    %v946 = vadd.f32 0.0, %v945
    %v947 = vpop.f32.mrb[0].mxu0
    %v948 = vpop.f32.mrb[0].mxu0
    %v949 = vadd.f32 0.0, %v948
    %v950 = vpop.f32.mrb[0].mxu0
    %951 = vmatprep.mubr.bf16.mxu0 0
    %952 = vmatmul.mubr.bf16.gmra.mrb[0].mxu0 %v734
    %v953 = vpop.f32.mrb[0].mxu0
    %v954 = vadd.f32 0.0, %v953
    %v955 = vpop.f32.mrb[0].mxu0
    %v956 = vpop.f32.mrb[0].mxu0
    %v957 = vadd.f32 0.0, %v956
    %v958 = vpop.f32.mrb[0].mxu0
    %959 = vdwg.mxu0
    %p960 = scmp.eq.s32.totalorder 0, 0
    // Predicated region
    $region42: #{tpu_custom_call.1} parent=1 // pred_check
      %p961 = pneg %p960
    $region43: #{tpu_custom_call.1} parent=1 // pred_check_branch
      %963 = sbr.rel (%p961) target = $region45
    $region44: #{tpu_custom_call.1} parent=1 // pred_region
      %964 = vst.msk [vmem:[#allocation2] sm:$0xff] %vm221, %v834
      %965 = vst.msk [vmem:[#allocation2 + $0x8] sm:$0xff] %vm221, %v837
      %966 = vst.msk [vmem:[#allocation2 + $0x10] sm:$0xff] %vm221, %v842
      %967 = vst.msk [vmem:[#allocation2 + $0x18] sm:$0xff] %vm221, %v845
      %968 = vst.msk [vmem:[#allocation2 + $0x20] sm:$0xff] %vm221, %v850
      %969 = vst.msk [vmem:[#allocation2 + $0x28] sm:$0xff] %vm221, %v853
      %970 = vst.msk [vmem:[#allocation2 + $0x30] sm:$0xff] %vm221, %v858
      %971 = vst.msk [vmem:[#allocation2 + $0x38] sm:$0xff] %vm221, %v861
      %972 = vst.msk [vmem:[#allocation2 + $0x40] sm:$0xff] %vm221, %v866
      %973 = vst.msk [vmem:[#allocation2 + $0x48] sm:$0xff] %vm221, %v869
      %974 = vst.msk [vmem:[#allocation2 + $0x50] sm:$0xff] %vm221, %v874
      %975 = vst.msk [vmem:[#allocation2 + $0x58] sm:$0xff] %vm221, %v877
      %976 = vst.msk [vmem:[#allocation2 + $0x60] sm:$0xff] %vm221, %v882
      %977 = vst.msk [vmem:[#allocation2 + $0x68] sm:$0xff] %vm221, %v885
      %978 = vst.msk [vmem:[#allocation2 + $0x70] sm:$0xff] %vm221, %v890
      %979 = vst.msk [vmem:[#allocation2 + $0x78] sm:$0xff] %vm221, %v893
      %980 = vst.msk [vmem:[#allocation2 + $0x80] sm:$0xff] %vm221, %v898
      %981 = vst.msk [vmem:[#allocation2 + $0x88] sm:$0xff] %vm221, %v901
      %982 = vst.msk [vmem:[#allocation2 + $0x90] sm:$0xff] %vm221, %v906
      %983 = vst.msk [vmem:[#allocation2 + $0x98] sm:$0xff] %vm221, %v909
      %984 = vst.msk [vmem:[#allocation2 + $0xa0] sm:$0xff] %vm221, %v914
      %985 = vst.msk [vmem:[#allocation2 + $0xa8] sm:$0xff] %vm221, %v917
      %986 = vst.msk [vmem:[#allocation2 + $0xb0] sm:$0xff] %vm221, %v922
      %987 = vst.msk [vmem:[#allocation2 + $0xb8] sm:$0xff] %vm221, %v925
      %988 = vst.msk [vmem:[#allocation2 + $0xc0] sm:$0xff] %vm221, %v930
      %989 = vst.msk [vmem:[#allocation2 + $0xc8] sm:$0xff] %vm221, %v933
      %990 = vst.msk [vmem:[#allocation2 + $0xd0] sm:$0xff] %vm221, %v938
      %991 = vst.msk [vmem:[#allocation2 + $0xd8] sm:$0xff] %vm221, %v941
      %992 = vst.msk [vmem:[#allocation2 + $0xe0] sm:$0xff] %vm221, %v946
      %993 = vst.msk [vmem:[#allocation2 + $0xe8] sm:$0xff] %vm221, %v949
      %994 = vst.msk [vmem:[#allocation2 + $0xf0] sm:$0xff] %vm221, %v954
      %995 = vst.msk [vmem:[#allocation2 + $0xf8] sm:$0xff] %vm221, %v957
    $region45: #{tpu_custom_call.1} parent=1 // pred_fallthru
      _
    %p996 = scmp.ne.s32.totalorder 0, 0
    // Predicated region
    $region46: #{tpu_custom_call.1} parent=1 // pred_check
      %p997 = pneg %p996
    $region47: #{tpu_custom_call.1} parent=1 // pred_check_branch
      %999 = sbr.rel (%p997) target = $region49
    $region48: #{tpu_custom_call.1} parent=1 // pred_region
      %v1000 = vld [vmem:[#allocation2] sm:$0xff]
      %v1001 = vld [vmem:[#allocation2 + $0x8] sm:$0xff]
      %v1002 = vld [vmem:[#allocation2 + $0x10] sm:$0xff]
      %v1003 = vld [vmem:[#allocation2 + $0x18] sm:$0xff]
      %v1004 = vld [vmem:[#allocation2 + $0x20] sm:$0xff]
      %v1005 = vld [vmem:[#allocation2 + $0x28] sm:$0xff]
      %v1006 = vld [vmem:[#allocation2 + $0x30] sm:$0xff]
      %v1007 = vld [vmem:[#allocation2 + $0x38] sm:$0xff]
      %v1008 = vld [vmem:[#allocation2 + $0x40] sm:$0xff]
      %v1009 = vld [vmem:[#allocation2 + $0x48] sm:$0xff]
      %v1010 = vld [vmem:[#allocation2 + $0x50] sm:$0xff]
      %v1011 = vld [vmem:[#allocation2 + $0x58] sm:$0xff]
      %v1012 = vld [vmem:[#allocation2 + $0x60] sm:$0xff]
      %v1013 = vld [vmem:[#allocation2 + $0x68] sm:$0xff]
      %v1014 = vld [vmem:[#allocation2 + $0x70] sm:$0xff]
      %v1015 = vld [vmem:[#allocation2 + $0x78] sm:$0xff]
      %v1016 = vld [vmem:[#allocation2 + $0x80] sm:$0xff]
      %v1017 = vld [vmem:[#allocation2 + $0x88] sm:$0xff]
      %v1018 = vld [vmem:[#allocation2 + $0x90] sm:$0xff]
      %v1019 = vld [vmem:[#allocation2 + $0x98] sm:$0xff]
      %v1020 = vld [vmem:[#allocation2 + $0xa0] sm:$0xff]
      %v1021 = vld [vmem:[#allocation2 + $0xa8] sm:$0xff]
      %v1022 = vld [vmem:[#allocation2 + $0xb0] sm:$0xff]
      %v1023 = vld [vmem:[#allocation2 + $0xb8] sm:$0xff]
      %v1024 = vld [vmem:[#allocation2 + $0xc0] sm:$0xff]
      %v1025 = vld [vmem:[#allocation2 + $0xc8] sm:$0xff]
      %v1026 = vld [vmem:[#allocation2 + $0xd0] sm:$0xff]
      %v1027 = vld [vmem:[#allocation2 + $0xd8] sm:$0xff]
      %v1028 = vld [vmem:[#allocation2 + $0xe0] sm:$0xff]
      %v1029 = vld [vmem:[#allocation2 + $0xe8] sm:$0xff]
      %v1030 = vld [vmem:[#allocation2 + $0xf0] sm:$0xff]
      %v1031 = vld [vmem:[#allocation2 + $0xf8] sm:$0xff]
      %v1032 = vadd.f32 %v1000, %v834
      %v1033 = vadd.f32 %v1001, %v837
      %v1034 = vadd.f32 %v1002, %v842
      %v1035 = vadd.f32 %v1003, %v845
      %v1036 = vadd.f32 %v1004, %v850
      %v1037 = vadd.f32 %v1005, %v853
      %v1038 = vadd.f32 %v1006, %v858
      %v1039 = vadd.f32 %v1007, %v861
      %v1040 = vadd.f32 %v1008, %v866
      %v1041 = vadd.f32 %v1009, %v869
      %v1042 = vadd.f32 %v1010, %v874
      %v1043 = vadd.f32 %v1011, %v877
      %v1044 = vadd.f32 %v1012, %v882
      %v1045 = vadd.f32 %v1013, %v885
      %v1046 = vadd.f32 %v1014, %v890
      %v1047 = vadd.f32 %v1015, %v893
      %v1048 = vadd.f32 %v1016, %v898
      %v1049 = vadd.f32 %v1017, %v901
      %v1050 = vadd.f32 %v1018, %v906
      %v1051 = vadd.f32 %v1019, %v909
      %v1052 = vadd.f32 %v1020, %v914
      %v1053 = vadd.f32 %v1021, %v917
      %v1054 = vadd.f32 %v1022, %v922
      %v1055 = vadd.f32 %v1023, %v925
      %v1056 = vadd.f32 %v1024, %v930
      %v1057 = vadd.f32 %v1025, %v933
      %v1058 = vadd.f32 %v1026, %v938
      %v1059 = vadd.f32 %v1027, %v941
      %v1060 = vadd.f32 %v1028, %v946
      %v1061 = vadd.f32 %v1029, %v949
      %v1062 = vadd.f32 %v1030, %v954
      %v1063 = vadd.f32 %v1031, %v957
      %1064 = vst.msk [vmem:[#allocation2] sm:$0xff] %vm221, %v1032
      %1065 = vst.msk [vmem:[#allocation2 + $0x8] sm:$0xff] %vm221, %v1033
      %1066 = vst.msk [vmem:[#allocation2 + $0x10] sm:$0xff] %vm221, %v1034
      %1067 = vst.msk [vmem:[#allocation2 + $0x18] sm:$0xff] %vm221, %v1035
      %1068 = vst.msk [vmem:[#allocation2 + $0x20] sm:$0xff] %vm221, %v1036
      %1069 = vst.msk [vmem:[#allocation2 + $0x28] sm:$0xff] %vm221, %v1037
      %1070 = vst.msk [vmem:[#allocation2 + $0x30] sm:$0xff] %vm221, %v1038
      %1071 = vst.msk [vmem:[#allocation2 + $0x38] sm:$0xff] %vm221, %v1039
      %1072 = vst.msk [vmem:[#allocation2 + $0x40] sm:$0xff] %vm221, %v1040
      %1073 = vst.msk [vmem:[#allocation2 + $0x48] sm:$0xff] %vm221, %v1041
      %1074 = vst.msk [vmem:[#allocation2 + $0x50] sm:$0xff] %vm221, %v1042
      %1075 = vst.msk [vmem:[#allocation2 + $0x58] sm:$0xff] %vm221, %v1043
      %1076 = vst.msk [vmem:[#allocation2 + $0x60] sm:$0xff] %vm221, %v1044
      %1077 = vst.msk [vmem:[#allocation2 + $0x68] sm:$0xff] %vm221, %v1045
      %1078 = vst.msk [vmem:[#allocation2 + $0x70] sm:$0xff] %vm221, %v1046
      %1079 = vst.msk [vmem:[#allocation2 + $0x78] sm:$0xff] %vm221, %v1047
      %1080 = vst.msk [vmem:[#allocation2 + $0x80] sm:$0xff] %vm221, %v1048
      %1081 = vst.msk [vmem:[#allocation2 + $0x88] sm:$0xff] %vm221, %v1049
      %1082 = vst.msk [vmem:[#allocation2 + $0x90] sm:$0xff] %vm221, %v1050
      %1083 = vst.msk [vmem:[#allocation2 + $0x98] sm:$0xff] %vm221, %v1051
      %1084 = vst.msk [vmem:[#allocation2 + $0xa0] sm:$0xff] %vm221, %v1052
      %1085 = vst.msk [vmem:[#allocation2 + $0xa8] sm:$0xff] %vm221, %v1053
      %1086 = vst.msk [vmem:[#allocation2 + $0xb0] sm:$0xff] %vm221, %v1054
      %1087 = vst.msk [vmem:[#allocation2 + $0xb8] sm:$0xff] %vm221, %v1055
      %1088 = vst.msk [vmem:[#allocation2 + $0xc0] sm:$0xff] %vm221, %v1056
      %1089 = vst.msk [vmem:[#allocation2 + $0xc8] sm:$0xff] %vm221, %v1057
      %1090 = vst.msk [vmem:[#allocation2 + $0xd0] sm:$0xff] %vm221, %v1058
      %1091 = vst.msk [vmem:[#allocation2 + $0xd8] sm:$0xff] %vm221, %v1059
      %1092 = vst.msk [vmem:[#allocation2 + $0xe0] sm:$0xff] %vm221, %v1060
      %1093 = vst.msk [vmem:[#allocation2 + $0xe8] sm:$0xff] %vm221, %v1061
      %1094 = vst.msk [vmem:[#allocation2 + $0xf0] sm:$0xff] %vm221, %v1062
      %1095 = vst.msk [vmem:[#allocation2 + $0xf8] sm:$0xff] %vm221, %v1063
    $region49: #{tpu_custom_call.1} parent=1 // pred_fallthru
      _
    // Predicated region
    $region50: #{tpu_custom_call.1} parent=1 // pred_check
      %p1096 = pneg %p960
    $region51: #{tpu_custom_call.1} parent=1 // pred_check_branch
      %1098 = sbr.rel (%p1096) target = $region53
    $region52: #{tpu_custom_call.1} parent=1 // pred_region
      %v1099 = vld [vmem:[#allocation2] sm:$0xff]
      %v1100 = vld [vmem:[#allocation2 + $0x8] sm:$0xff]
      %v1101 = vld [vmem:[#allocation2 + $0x10] sm:$0xff]
      %v1102 = vld [vmem:[#allocation2 + $0x18] sm:$0xff]
      %v1103 = vld [vmem:[#allocation2 + $0x20] sm:$0xff]
      %v1104 = vld [vmem:[#allocation2 + $0x28] sm:$0xff]
      %v1105 = vld [vmem:[#allocation2 + $0x30] sm:$0xff]
      %v1106 = vld [vmem:[#allocation2 + $0x38] sm:$0xff]
      %v1107 = vld [vmem:[#allocation2 + $0x40] sm:$0xff]
      %v1108 = vld [vmem:[#allocation2 + $0x48] sm:$0xff]
      %v1109 = vld [vmem:[#allocation2 + $0x50] sm:$0xff]
      %v1110 = vld [vmem:[#allocation2 + $0x58] sm:$0xff]
      %v1111 = vld [vmem:[#allocation2 + $0x60] sm:$0xff]
      %v1112 = vld [vmem:[#allocation2 + $0x68] sm:$0xff]
      %v1113 = vld [vmem:[#allocation2 + $0x70] sm:$0xff]
      %v1114 = vld [vmem:[#allocation2 + $0x78] sm:$0xff]
      %v1115 = vld [vmem:[#allocation2 + $0x80] sm:$0xff]
      %v1116 = vld [vmem:[#allocation2 + $0x88] sm:$0xff]
      %v1117 = vld [vmem:[#allocation2 + $0x90] sm:$0xff]
      %v1118 = vld [vmem:[#allocation2 + $0x98] sm:$0xff]
      %v1119 = vld [vmem:[#allocation2 + $0xa0] sm:$0xff]
      %v1120 = vld [vmem:[#allocation2 + $0xa8] sm:$0xff]
      %v1121 = vld [vmem:[#allocation2 + $0xb0] sm:$0xff]
      %v1122 = vld [vmem:[#allocation2 + $0xb8] sm:$0xff]
      %v1123 = vld [vmem:[#allocation2 + $0xc0] sm:$0xff]
      %v1124 = vld [vmem:[#allocation2 + $0xc8] sm:$0xff]
      %v1125 = vld [vmem:[#allocation2 + $0xd0] sm:$0xff]
      %v1126 = vld [vmem:[#allocation2 + $0xd8] sm:$0xff]
      %v1127 = vld [vmem:[#allocation2 + $0xe0] sm:$0xff]
      %v1128 = vld [vmem:[#allocation2 + $0xe8] sm:$0xff]
      %v1129 = vld [vmem:[#allocation2 + $0xf0] sm:$0xff]
      %v1130 = vld [vmem:[#allocation2 + $0xf8] sm:$0xff]
      %v1131 = vld [vmem:[#allocation11] sm:$0x1]
      %v1133 = vlaneseq
      %v1134 = vshrl.u32 %v1133, 7
      %v1135 = vsub.s32 0, %v1134
      %v1136 = vrot.slane %v1131, %v1135
      %v1138 = vadd.f32 %v1099, %v1136
      %v1139 = vadd.f32 %v1100, %v1136
      %v1140 = vadd.f32 %v1101, %v1136
      %v1141 = vadd.f32 %v1102, %v1136
      %v1142 = vadd.f32 %v1103, %v1136
      %v1143 = vadd.f32 %v1104, %v1136
      %v1144 = vadd.f32 %v1105, %v1136
      %v1145 = vadd.f32 %v1106, %v1136
      %v1146 = vadd.f32 %v1107, %v1136
      %v1147 = vadd.f32 %v1108, %v1136
      %v1148 = vadd.f32 %v1109, %v1136
      %v1149 = vadd.f32 %v1110, %v1136
      %v1150 = vadd.f32 %v1111, %v1136
      %v1151 = vadd.f32 %v1112, %v1136
      %v1152 = vadd.f32 %v1113, %v1136
      %v1153 = vadd.f32 %v1114, %v1136
      %v1154 = vadd.f32 %v1115, %v1136
      %v1155 = vadd.f32 %v1116, %v1136
      %v1156 = vadd.f32 %v1117, %v1136
      %v1157 = vadd.f32 %v1118, %v1136
      %v1158 = vadd.f32 %v1119, %v1136
      %v1159 = vadd.f32 %v1120, %v1136
      %v1160 = vadd.f32 %v1121, %v1136
      %v1161 = vadd.f32 %v1122, %v1136
      %v1162 = vadd.f32 %v1123, %v1136
      %v1163 = vadd.f32 %v1124, %v1136
      %v1164 = vadd.f32 %v1125, %v1136
      %v1165 = vadd.f32 %v1126, %v1136
      %v1166 = vadd.f32 %v1127, %v1136
      %v1167 = vadd.f32 %v1128, %v1136
      %v1168 = vadd.f32 %v1129, %v1136
      %v1169 = vadd.f32 %v1130, %v1136
      %1170 = vst.msk [vmem:[#allocation12] sm:$0xff] %vm221, %v1138
      %1171 = vst.msk [vmem:[#allocation12 + $0x8] sm:$0xff] %vm221, %v1139
      %1172 = vst.msk [vmem:[#allocation12 + $0x10] sm:$0xff] %vm221, %v1140
      %1173 = vst.msk [vmem:[#allocation12 + $0x18] sm:$0xff] %vm221, %v1141
      %1174 = vst.msk [vmem:[#allocation12 + $0x20] sm:$0xff] %vm221, %v1142
      %1175 = vst.msk [vmem:[#allocation12 + $0x28] sm:$0xff] %vm221, %v1143
      %1176 = vst.msk [vmem:[#allocation12 + $0x30] sm:$0xff] %vm221, %v1144
      %1177 = vst.msk [vmem:[#allocation12 + $0x38] sm:$0xff] %vm221, %v1145
      %1178 = vst.msk [vmem:[#allocation12 + $0x40] sm:$0xff] %vm221, %v1146
      %1179 = vst.msk [vmem:[#allocation12 + $0x48] sm:$0xff] %vm221, %v1147
      %1180 = vst.msk [vmem:[#allocation12 + $0x50] sm:$0xff] %vm221, %v1148
      %1181 = vst.msk [vmem:[#allocation12 + $0x58] sm:$0xff] %vm221, %v1149
      %1182 = vst.msk [vmem:[#allocation12 + $0x60] sm:$0xff] %vm221, %v1150
      %1183 = vst.msk [vmem:[#allocation12 + $0x68] sm:$0xff] %vm221, %v1151
      %1184 = vst.msk [vmem:[#allocation12 + $0x70] sm:$0xff] %vm221, %v1152
      %1185 = vst.msk [vmem:[#allocation12 + $0x78] sm:$0xff] %vm221, %v1153
      %1186 = vst.msk [vmem:[#allocation12 + $0x80] sm:$0xff] %vm221, %v1154
      %1187 = vst.msk [vmem:[#allocation12 + $0x88] sm:$0xff] %vm221, %v1155
      %1188 = vst.msk [vmem:[#allocation12 + $0x90] sm:$0xff] %vm221, %v1156
      %1189 = vst.msk [vmem:[#allocation12 + $0x98] sm:$0xff] %vm221, %v1157
      %1190 = vst.msk [vmem:[#allocation12 + $0xa0] sm:$0xff] %vm221, %v1158
      %1191 = vst.msk [vmem:[#allocation12 + $0xa8] sm:$0xff] %vm221, %v1159
      %1192 = vst.msk [vmem:[#allocation12 + $0xb0] sm:$0xff] %vm221, %v1160
      %1193 = vst.msk [vmem:[#allocation12 + $0xb8] sm:$0xff] %vm221, %v1161
      %1194 = vst.msk [vmem:[#allocation12 + $0xc0] sm:$0xff] %vm221, %v1162
      %1195 = vst.msk [vmem:[#allocation12 + $0xc8] sm:$0xff] %vm221, %v1163
      %1196 = vst.msk [vmem:[#allocation12 + $0xd0] sm:$0xff] %vm221, %v1164
      %1197 = vst.msk [vmem:[#allocation12 + $0xd8] sm:$0xff] %vm221, %v1165
      %1198 = vst.msk [vmem:[#allocation12 + $0xe0] sm:$0xff] %vm221, %v1166
      %1199 = vst.msk [vmem:[#allocation12 + $0xe8] sm:$0xff] %vm221, %v1167
      %1200 = vst.msk [vmem:[#allocation12 + $0xf0] sm:$0xff] %vm221, %v1168
      %1201 = vst.msk [vmem:[#allocation12 + $0xf8] sm:$0xff] %vm221, %v1169
    $region53: #{tpu_custom_call.1} parent=1 // pred_fallthru
      _
    // Predicated region
    $region54: #{tpu_custom_call.1} parent=1 // pred_check
      _
    $region55: #{tpu_custom_call.1} parent=1 // pred_check_branch
      %1203 = sbr.rel (0) target = $region57
    $region56: #{tpu_custom_call.1} parent=1 // pred_region
      %s1205 = ssub.s32 4096, 4096
      %1206 = vsyncadd [#allocation5], %s1205
      %s1207 = sshll.u32 [#allocation12], 4
      %s1208 = int_to_ptr.vmem [resolvable:$true] %s1207
      %1213 = dma.vmem_to_hbm [thread:$0]  %s1208, 4096, %s5, [#allocation5], 128, 128, 8
    $region57: #{tpu_custom_call.1} parent=1 // pred_fallthru
      _
    // Predicated region
    $region58: #{tpu_custom_call.1} parent=1 // pred_check
      _
    $region59: #{tpu_custom_call.1} parent=1 // pred_check_branch
      %1215 = sbr.rel (0) target = $region61
    $region60: #{tpu_custom_call.1} parent=1 // pred_region
      %1216 = dma.done [#allocation5], 4096
    $region61: #{tpu_custom_call.1} parent=1 // pred_fallthru
      _
    %1217 = vsyncpa [#allocation4], 1
    %1218 = vsyncpa [#allocation7], 1
    %1219 = vsyncpa [#allocation10], 1
    %1220 = vsyncpa [#allocation5], 1

</llo_original>
